<compile_context>
chip_gen: v5e
topology: v5e:2x2
jax: 0.10.0
libtpu: 0.0.40
codegen_flags: <defaults>
</compile_context>

<pallas_src>
import jax
import jax.numpy as jnp
from jax.experimental import pallas as pl
from jax.experimental.pallas import tpu as pltpu


_TARGET_BLOCK_BYTES = 2 * 1024 * 1024   # ~2 MiB/block: >=85% of HBM roofline, fits
                                        # default scoped VMEM (double-buffered in+out
                                        # = ~8 MiB) on v5e/v6e/v7x.
_MAX_TILE_L = 1024                      # row cap per block (multiple of 8/16).


def _height_projection_kernel(scalars_ref, levels_ref, gratings_ref, out_ref):
    """Fused height-mask construction + broadcast multiply for one [tile_l, tile_w] block.

    scalars_ref : SMEM f32[3]            -> (ridge_height, sharpness, threshold)
    levels_ref  : VMEM f32[tile_l, 1]    -> height levels for this row block
    gratings_ref: VMEM [tile_l, tile_w]  -> input dtype
    out_ref     : VMEM [tile_l, tile_w]  -> input dtype
    """
    ridge_height = scalars_ref[0]
    sharpness = scalars_ref[1]
    threshold = scalars_ref[2]

    levels = levels_ref[...]                                       # [tile_l, 1] f32
    # Soft projection (EUP sigmoid) below threshold; hard step at/above it.
    # Recomputed per block: ~tile_l transcendentals, fully hidden under the DMA.
    soft = jax.nn.sigmoid(sharpness * (ridge_height - levels))
    hard = (levels <= ridge_height).astype(jnp.float32)
    mask = jnp.where(sharpness < threshold, soft, hard)             # [tile_l, 1] f32

    # Multiply in the streamed dtype (no f32 round-trip for bf16 inputs).
    out_ref[...] = gratings_ref[...] * mask.astype(out_ref.dtype)


def height_projection(ridge_height, gratings, sharpness, resolution,
                      threshold=10.0, height_max=1.0, donate_gratings=False):
    """JAX/Pallas equivalent of heightProjection.forward.

    gratings: [L, W] with L = round(height_max * resolution) + 1.
    """
    num_levels = int(round(height_max * resolution)) + 1
    L, W = gratings.shape
    assert L == num_levels, (
        f"gratings leading dim {L} must equal height_max*resolution+1 = {num_levels}")

    out_dtype = gratings.dtype
    itemsize = jnp.dtype(out_dtype).itemsize

    # Same linspace levels as the PyTorch module (no i*step ULP drift vs. reference).
    levels = jnp.linspace(0.0, height_max, num_levels,
                          dtype=jnp.float32).reshape(L, 1)

    # Byte-targeted tiling: ~_TARGET_BLOCK_BYTES per block.  tile_l is the full L
    # (allowed even when not a multiple of 8) or a 1024-row cap; tile_w is the full
    # W or a 128-multiple, with Pallas masking the ragged boundary tiles.
    tile_l = L if L <= _MAX_TILE_L else _MAX_TILE_L
    tw = max(128, (_TARGET_BLOCK_BYTES // (tile_l * itemsize)) // 128 * 128)
    tile_w = W if W <= tw else tw
    grid = (pl.cdiv(L, tile_l), pl.cdiv(W, tile_w))

    scalars = jnp.array([ridge_height, sharpness, threshold], dtype=jnp.float32)

    extra = {}
    if donate_gratings:
        # pallas_call args are (scalars, levels, gratings) -> gratings is input 2.
        extra["input_output_aliases"] = {2: 0}

    out = pl.pallas_call(
        _height_projection_kernel,
        out_shape=jax.ShapeDtypeStruct((L, W), out_dtype),
        grid_spec=pltpu.PrefetchScalarGridSpec(
            num_scalar_prefetch=1,                  # scalars -> SMEM before the grid
            grid=grid,
            in_specs=[
                pl.BlockSpec((tile_l, 1), lambda i, j, s: (i, 0)),       # levels
                pl.BlockSpec((tile_l, tile_w), lambda i, j, s: (i, j)),  # gratings
            ],
            out_specs=pl.BlockSpec((tile_l, tile_w), lambda i, j, s: (i, j)),
        ),
        compiler_params=pltpu.CompilerParams(
            # No cross-step state: both axes are independent -> v7x megacore can
            # shard either one.
            dimension_semantics=("parallel", "parallel"),
        ),
        cost_estimate=pl.CostEstimate(
            flops=int(L) * int(W),
            transcendentals=int(L) * int(grid[1]),
            bytes_accessed=2 * int(L) * int(W) * int(itemsize) + 4 * int(L),
        ),
        **extra,
    )(scalars, levels, gratings)
    return out


def _reference(ridge_height, gratings, sharpness, resolution,
               threshold=10.0, height_max=1.0):
    """Pure-JAX reference of the same forward pass (f32 accumulate)."""
    num_levels = int(round(height_max * resolution)) + 1
    levels = jnp.linspace(0.0, height_max, num_levels, dtype=jnp.float32)
    soft = jax.nn.sigmoid(sharpness * (ridge_height - levels))
    hard = (levels <= ridge_height).astype(jnp.float32)
    mask = jnp.where(sharpness < threshold, soft, hard)
    return (gratings.astype(jnp.float32) * mask[:, None]).astype(gratings.dtype)


if __name__ == "__main__":
    key = jax.random.PRNGKey(0)
    k1, k2, k3 = jax.random.split(key, 3)

    threshold = 10.0
    height_max = 1.0
    ridge_height = 0.613   # not on any level grid point
    sharpness = 4.0        # below threshold -> soft sigmoid mask

    # --- Case 1: module-default small shape (L=17, W=16; W not a 128 multiple,
    #     handled as a full-extent block, no wrapper padding).
    resolution = 16
    L1 = int(round(height_max * resolution)) + 1
    g1 = jax.random.uniform(k1, (L1, 16), dtype=jnp.float32)

    out1 = jax.block_until_ready(
        height_projection(ridge_height, g1, sharpness, resolution,
                          threshold=threshold, height_max=height_max))
    ref1 = _reference(ridge_height, g1, sharpness, resolution,
                      threshold=threshold, height_max=height_max)
    assert out1.shape == g1.shape and out1.dtype == g1.dtype
    assert jnp.allclose(out1, ref1, atol=1e-5, rtol=1e-5), "case1 soft mismatch"

    # Hard-projection branch (sharpness >= threshold).
    out1h = jax.block_until_ready(
        height_projection(ridge_height, g1, 50.0, resolution,
                          threshold=threshold, height_max=height_max))
    ref1h = _reference(ridge_height, g1, 50.0, resolution,
                       threshold=threshold, height_max=height_max)
    assert jnp.allclose(out1h, ref1h, atol=1e-5, rtol=1e-5), "case1 hard mismatch"

    # --- Case 2: multiple L tiles (partial last row block) and ragged W boundary
    #     block (W=1200 with tile_w=512 -> masked stores only on the edge tile).
    resolution2 = 1040
    L2 = int(round(height_max * resolution2)) + 1          # 1041 rows
    g2 = jax.random.uniform(k2, (L2, 1200), dtype=jnp.float32)
    out2 = jax.block_until_ready(
        height_projection(ridge_height, g2, sharpness, resolution2,
                          threshold=threshold, height_max=height_max))
    ref2 = _reference(ridge_height, g2, sharpness, resolution2,
                      threshold=threshold, height_max=height_max)
    assert out2.shape == g2.shape
    assert jnp.allclose(out2, ref2, atol=1e-5, rtol=1e-5), "case2 mismatch"

    # --- Case 3: bf16 I/O (multiply stays in bf16 inside the kernel).
    g3 = jax.random.uniform(
        k3, (L1, 2176), dtype=jnp.float32).astype(jnp.bfloat16)
    out3 = jax.block_until_ready(
        height_projection(ridge_height, g3, sharpness, resolution,
                          threshold=threshold, height_max=height_max))
    ref3 = _reference(ridge_height, g3, sharpness, resolution,
                      threshold=threshold, height_max=height_max)
    assert out3.dtype == jnp.bfloat16 and out3.shape == g3.shape
    assert jnp.allclose(out3.astype(jnp.float32), ref3.astype(jnp.float32),
                        atol=2e-2, rtol=2e-2), "case3 bf16 mismatch"

    print("KERNEL_OK")
</pallas_src>

<mosaic_0001>
module attributes {stable_mosaic.version = 11 : i64} {
  func.func @_height_projection_kernel(%arg0: i32, %arg1: i32, %arg2: memref<3xf32, #tpu.memory_space<smem>>, %arg3: memref<17x1xf32, #tpu.memory_space<vmem>>, %arg4: memref<17x16xf32, #tpu.memory_space<vmem>>, %arg5: memref<17x16xf32, #tpu.memory_space<vmem>>) attributes {dimension_semantics = [#tpu.dimension_semantics<parallel>, #tpu.dimension_semantics<parallel>], iteration_bounds = array<i64: 1, 1>, scalar_prefetch = 1 : i64, scratch_operands = 0 : i64, tpu.core_type = #tpu.core_type<tc>, window_params = [{transform_indices = @transform_0, window_bounds = array<i64: 17, 1>}, {transform_indices = @transform_1, window_bounds = array<i64: 17, 16>}, {transform_indices = @transform_2, window_bounds = array<i64: 17, 16>}]} {
    %c0 = arith.constant 0 : index
    %0 = memref.load %arg2[%c0] : memref<3xf32, #tpu.memory_space<smem>>
    %c1 = arith.constant 1 : index
    %1 = memref.load %arg2[%c1] : memref<3xf32, #tpu.memory_space<smem>>
    %c2 = arith.constant 2 : index
    %2 = memref.load %arg2[%c2] : memref<3xf32, #tpu.memory_space<smem>>
    %c0_0 = arith.constant 0 : index
    %c0_1 = arith.constant 0 : index
    %3 = vector.load %arg3[%c0_0, %c0_1] : memref<17x1xf32, #tpu.memory_space<vmem>>, vector<17x1xf32>
    %4 = vector.broadcast %0 : f32 to vector<17x1xf32>
    %5 = arith.subf %4, %3 : vector<17x1xf32>
    %6 = vector.broadcast %1 : f32 to vector<17x1xf32>
    %7 = arith.mulf %6, %5 : vector<17x1xf32>
    %8 = arith.negf %7 : vector<17x1xf32>
    %9 = math.exp %8 : vector<17x1xf32>
    %cst = arith.constant 1.000000e+00 : f32
    %10 = vector.broadcast %cst : f32 to vector<17x1xf32>
    %11 = arith.addf %10, %9 : vector<17x1xf32>
    %12 = arith.divf %10, %11 : vector<17x1xf32>
    %13 = vector.broadcast %0 : f32 to vector<17x1xf32>
    %14 = arith.cmpf ole, %3, %13 : vector<17x1xf32>
    %15 = arith.extui %14 : vector<17x1xi1> to vector<17x1xi32>
    %16 = arith.sitofp %15 : vector<17x1xi32> to vector<17x1xf32>
    %17 = arith.cmpf olt, %1, %2 : f32
    %18 = arith.select %17, %12, %16 : vector<17x1xf32>
    %c0_2 = arith.constant 0 : index
    %c0_3 = arith.constant 0 : index
    %19 = vector.load %arg4[%c0_2, %c0_3] : memref<17x16xf32, #tpu.memory_space<vmem>>, vector<17x16xf32>
    %20 = vector.broadcast %18 : vector<17x1xf32> to vector<17x16xf32>
    %21 = arith.mulf %19, %20 : vector<17x16xf32>
    %c0_4 = arith.constant 0 : index
    %c0_5 = arith.constant 0 : index
    %22 = vector.load %arg5[%c0_4, %c0_5] : memref<17x16xf32, #tpu.memory_space<vmem>>, vector<17x16xf32>
    tpu.vector_store %arg5[%c0_4, %c0_5], %21 {strides = array<i32>} : memref<17x16xf32, #tpu.memory_space<vmem>>, vector<17x16xf32>,
    return
  }
  func.func @transform_0(%arg0: i32, %arg1: i32, %arg2: memref<3xf32, #tpu.memory_space<smem>>) -> (i32, i32) {
    %c0_i32 = arith.constant 0 : i32
    %c0_i32_0 = arith.constant 0 : i32
    return %arg0, %c0_i32 : i32, i32
  }
  func.func @transform_1(%arg0: i32, %arg1: i32, %arg2: memref<3xf32, #tpu.memory_space<smem>>) -> (i32, i32) {
    %c0_i32 = arith.constant 0 : i32
    return %arg0, %arg1 : i32, i32
  }
  func.func @transform_2(%arg0: i32, %arg1: i32, %arg2: memref<3xf32, #tpu.memory_space<smem>>) -> (i32, i32) {
    %c0_i32 = arith.constant 0 : i32
    return %arg0, %arg1 : i32, i32
  }
}

</mosaic_0001>

<llo_original>
// kernel: tpu_custom_call.1
$region0: #{tpu_custom_call.1}
  #allocation0 [shape = 'u32[]', space=smem, size = 0x4, offset = 0x4, fixed_abs, tag = 'smem constant byte address 0x4 - core index']
  #allocation1 [shape = 'u32[72,128]{1,0:T(1,128)}', space=vmem, size = 0x9000, scoped, tag = 'internal scratch']
  #allocation2 [shape = 's32[1]{0}', space=sflag, size = 0x4, scoped, tag = 'scoped memory for tpu_custom_call.1']
  #allocation3 [shape = 'u8[512]{0}', space=smem, size = 0x200, scoped, tag = 'prefetched SMEM operand 0']
  %s0 = inlined_call_operand.vmem [shape: f32[3], index: 0, kind: input, shape index: {}]
  %s1 = inlined_call_operand.vmem [shape: f32[17,1], index: 1, kind: input, shape index: {}]
  %s2 = inlined_call_operand.vmem [shape: f32[17,16], index: 2, kind: input, shape index: {}]
  %s3 = inlined_call_operand.vmem [shape: f32[17,16], index: 3, kind: output, shape index: {}]
  %s4 = sld [smem:[#allocation0]]
  $region18: #{tpu_custom_call.1} parent=0
    _
  %s6 = ssub.s32 1, %s4
  %s7 = scalar_select 0, %s6, %s4
  %s9 = sshll.u32 %s0, 4
  %s10 = int_to_ptr.vmem [resolvable:$true] %s9
  %12 = dma.vmem_to_smem %s10, 16, [#allocation3], [#allocation2]
  %14 = dma.done [#allocation2], 16
  %15 = sfence
  // Predicated region
  $region2: #{tpu_custom_call.1} parent=0 // pred_check
    _
  $region3: #{tpu_custom_call.1} parent=0 // pred_check_branch
    %17 = sbr.rel (0) target = $region5
  $region4: #{tpu_custom_call.1} parent=0 // pred_region
    _
  $region5: #{tpu_custom_call.1} parent=0 // pred_fallthru
    _
  // Predicated region
  $region6: #{tpu_custom_call.1} parent=0 // pred_check
    _
  $region7: #{tpu_custom_call.1} parent=0 // pred_check_branch
    %19 = sbr.rel (0) target = $region9
  $region8: #{tpu_custom_call.1} parent=0 // pred_region
    _
  $region9: #{tpu_custom_call.1} parent=0 // pred_fallthru
    _
  %s20 = sld [smem:[#allocation3]]
  %s21 = sld [smem:[#allocation3 + $0x1]]
  %s22 = sld [smem:[#allocation3 + $0x2]]
  %v23 = vld [vmem:[%s1] sm:$0xff]
  %v24 = vld [vmem:[%s1 + $0x8] sm:$0xff]
  %v25 = vld [vmem:[%s1 + $0x10] sm:$0x1]
  %v26 = vstv %s20
  %v27 = vsub.f32 %v26, %v23
  %v28 = vsub.f32 %v26, %v24
  %v29 = vsub.f32 %v26, %v25
  %v30 = vstv %s21
  %v31 = vmul.f32 %v30, %v27
  %v32 = vmul.f32 %v30, %v28
  %v33 = vmul.f32 %v30, %v29
  %v34 = vxor.u32 %v31, 2147483648
  %v35 = vxor.u32 %v32, 2147483648
  %v36 = vxor.u32 %v33, 2147483648
  %v37 = vmul.f32 %v34, 1.442695
  %v38 = vpow.pop %v37
  %v39 = vmul.f32 %v35, 1.442695
  %v40 = vpow.pop %v39
  %v41 = vmul.f32 %v36, 1.442695
  %v42 = vpow.pop %v41
  %v43 = vadd.f32 %v38, 1.0
  %v44 = vadd.f32 %v40, 1.0
  %v45 = vadd.f32 %v42, 1.0
  %v46 = vrcp.pop %v43
  %v47 = vmul.f32 %v43, %v46
  %v48 = vsub.f32 1.0, %v47
  %v49 = vmul.f32 %v46, %v48
  %v50 = vadd.f32 %v46, %v49
  %vm51 = vweird.f32 %v43
  %vm52 = vweird.f32 %v46
  %vm53 = vmor %vm51, %vm52
  %v54 = vsel %vm53, %v46, %v50
  %v55 = vand.u32 2147483647, %v43
  %vm56 = vcmp.eq.f32.partialorder %v55, 8.507059e+37
  %v57 = vand.u32 %v43, 2147483648
  %v58 = vor.u32 1.1754944e-38, %v57
  %v59 = vsel %vm56, %v58, %v54
  %v60 = vmul.f32 1.0, %v59
  %v61 = vrcp.pop %v44
  %v62 = vmul.f32 %v44, %v61
  %v63 = vsub.f32 1.0, %v62
  %v64 = vmul.f32 %v61, %v63
  %v65 = vadd.f32 %v61, %v64
  %vm66 = vweird.f32 %v44
  %vm67 = vweird.f32 %v61
  %vm68 = vmor %vm66, %vm67
  %v69 = vsel %vm68, %v61, %v65
  %v70 = vand.u32 2147483647, %v44
  %vm71 = vcmp.eq.f32.partialorder %v70, 8.507059e+37
  %v72 = vand.u32 %v44, 2147483648
  %v73 = vor.u32 1.1754944e-38, %v72
  %v74 = vsel %vm71, %v73, %v69
  %v75 = vmul.f32 1.0, %v74
  %v76 = vrcp.pop %v45
  %v77 = vmul.f32 %v45, %v76
  %v78 = vsub.f32 1.0, %v77
  %v79 = vmul.f32 %v76, %v78
  %v80 = vadd.f32 %v76, %v79
  %vm81 = vweird.f32 %v45
  %vm82 = vweird.f32 %v76
  %vm83 = vmor %vm81, %vm82
  %v84 = vsel %vm83, %v76, %v80
  %v85 = vand.u32 2147483647, %v45
  %vm86 = vcmp.eq.f32.partialorder %v85, 8.507059e+37
  %v87 = vand.u32 %v45, 2147483648
  %v88 = vor.u32 1.1754944e-38, %v87
  %v89 = vsel %vm86, %v88, %v84
  %v90 = vmul.f32 1.0, %v89
  %vm91 = vcmp.le.f32.partialorder %v23, %v26
  %vm92 = vcmp.le.f32.partialorder %v24, %v26
  %vm93 = vcmp.le.f32.partialorder %v25, %v26
  %v94 = vsel %vm91, 1, 0
  %v95 = vsel %vm92, 1, 0
  %v96 = vsel %vm93, 1, 0
  %v97 = vcvt.s32.f32 %v94
  %v98 = vcvt.s32.f32 %v95
  %v99 = vcvt.s32.f32 %v96
  %p100 = scmp.lt.f32.partialorder %s21, %s22
  %s101 = scalar_select %p100, 1, 0
  %v102 = vstv %s101
  %vm103 = vcmp.eq.s32.totalorder %v102, 1
  %v104 = vsel %vm103, %v60, %v97
  %v105 = vsel %vm103, %v75, %v98
  %v106 = vsel %vm103, %v90, %v99
  %v107 = vld [vmem:[%s2] sm:$0xff]
  %v108 = vld [vmem:[%s2 + $0x8] sm:$0xff]
  %v109 = vld [vmem:[%s2 + $0x10] sm:$0x1]
  %111 = vset.pattern.permute.xlu0 0
  %112 = vperm.xlu0 %111, %v104
  %v113 = vpop.permute.xlu0 %112
  %116 = vset.pattern.permute.xlu0 0
  %117 = vperm.xlu0 %116, %v105
  %v118 = vpop.permute.xlu0 %117
  %121 = vset.pattern.permute.xlu0 0
  %122 = vperm.xlu0 %121, %v106
  %v123 = vpop.permute.xlu0 %122
  %v125 = vmul.f32 %v107, %v113
  %v126 = vmul.f32 %v108, %v118
  %v127 = vmul.f32 %v109, %v123
  %vm128 = vcmask 130048
  %129 = vst.msk [vmem:[%s3] sm:$0xff] %vm128, %v125
  %130 = vst.msk [vmem:[%s3 + $0x8] sm:$0xff] %vm128, %v126
  %vm131 = vcmask 122880
  %132 = vst.msk [vmem:[%s3 + $0x10] sm:$0x1] %vm131, %v127
  // Predicated region
  $region10: #{tpu_custom_call.1} parent=0 // pred_check
    _
  $region11: #{tpu_custom_call.1} parent=0 // pred_check_branch
    %134 = sbr.rel (0) target = $region13
  $region12: #{tpu_custom_call.1} parent=0 // pred_region
    _
  $region13: #{tpu_custom_call.1} parent=0 // pred_fallthru
    _
  // Predicated region
  $region14: #{tpu_custom_call.1} parent=0 // pred_check
    _
  $region15: #{tpu_custom_call.1} parent=0 // pred_check_branch
    %136 = sbr.rel (0) target = $region17
  $region16: #{tpu_custom_call.1} parent=0 // pred_region
    _
  $region17: #{tpu_custom_call.1} parent=0 // pred_fallthru
    _

</llo_original>
